<compile_context>
chip_gen: v7x
topology: tpu7x:2x2x1
jax: 0.10.0
libtpu: 0.0.40
codegen_flags: <defaults>
</compile_context>

<pallas_src>
import functools
import math

import jax
import jax.numpy as jnp
from jax.experimental import pallas as pl
from jax.experimental.pallas import tpu as pltpu

_LANES = 128
_SUBLANES = 8
_RHO_PAD = math.log(math.expm1(1.0))  # softplus^-1(1): std=1 => KL element = 0


def _round_up(x, m):
    return -(-x // m) * m


def _bbp_kernel(x_ref, mu_ref, rho_ref, eps_ref, y_ref, kl_ref, *, dims, rows):
    (in1, out1), (in2, out2), (in3, out3) = dims
    r1, r2, r3, rb = rows

    mu = mu_ref[...]
    rho = rho_ref[...]
    eps = eps_ref[...]

    # std = softplus(rho), overflow-safe.  One pass over the whole slab.
    std = jnp.maximum(rho, 0.0) + jnp.log(1.0 + jnp.exp(-jnp.abs(rho)))
    w = mu + eps * std

    # KL vs. N(0,1) prior, computed once (same value every grid step).
    @pl.when(pl.program_id(0) == 0)
    def _():
        # log(var) = 2*log(std); guard underflow (softplus(x) ~ exp(x), x<<0).
        log_std = jnp.where(rho > -15.0, jnp.log(jnp.maximum(std, 1e-30)), rho)
        kl = 0.5 * jnp.sum(std * std + mu * mu - 1.0 - 2.0 * log_std)
        kl_ref[...] = jnp.broadcast_to(kl, kl_ref.shape)

    # Slice sampled weights out of the slab (values stay in vregs/VMEM).
    w1 = w[r1:r1 + in1, :out1]
    w2 = w[r2:r2 + in2, :out2]
    w3 = w[r3:r3 + in3, :]            # all 128 lanes -> lane-dense y store
    b1 = w[rb + 0:rb + 1, :out1]
    b2 = w[rb + 1:rb + 2, :out2]
    b3 = w[rb + 2:rb + 3, :]

    # Fused 3-layer MLP; activations never leave the chip between layers.
    h = jnp.dot(x_ref[...], w1, preferred_element_type=jnp.float32) + b1
    h = jnp.maximum(h, 0.0)
    h = jnp.dot(h, w2, preferred_element_type=jnp.float32) + b2
    h = jnp.maximum(h, 0.0)
    y = jnp.dot(h, w3, preferred_element_type=jnp.float32) + b3
    y_ref[...] = y.astype(y_ref.dtype)  # full-width (tile_m, 128) store


def pack_params(params):
    """Pack the 3 layers' (wmu, wrho, bmu, brho) into two (R,128) slabs. Do once."""
    (w1mu, w1rho, b1mu, b1rho), (w2mu, w2rho, b2mu, b2rho), \
        (w3mu, w3rho, b3mu, b3rho) = params

    dims = ((w1mu.shape[0], w1mu.shape[1]),
            (w2mu.shape[0], w2mu.shape[1]),
            (w3mu.shape[0], w3mu.shape[1]))
    L = _round_up(max(o for _, o in dims), _LANES)
    r1 = 0
    r2 = _round_up(r1 + dims[0][0], _SUBLANES)
    r3 = _round_up(r2 + dims[1][0], _SUBLANES)
    rb = _round_up(r3 + dims[2][0], _SUBLANES)
    R = _round_up(rb + 3, _SUBLANES)

    # Padding: mu=0, rho=softplus^-1(1) -> std=1, var=1 -> zero KL contribution.
    mu_slab = jnp.zeros((R, L), jnp.float32)
    rho_slab = jnp.full((R, L), _RHO_PAD, jnp.float32)

    def put(mu_s, rho_s, row, mu_w, rho_w, mu_b, rho_b, din, dout):
        mu_s = mu_s.at[row:row + din, :dout].set(jnp.asarray(mu_w, jnp.float32))
        rho_s = rho_s.at[row:row + din, :dout].set(jnp.asarray(rho_w, jnp.float32))
        return mu_s, rho_s, mu_b, rho_b

    mu_slab, rho_slab, _, _ = put(mu_slab, rho_slab, r1, w1mu, w1rho, None, None, *dims[0])
    mu_slab, rho_slab, _, _ = put(mu_slab, rho_slab, r2, w2mu, w2rho, None, None, *dims[1])
    mu_slab, rho_slab, _, _ = put(mu_slab, rho_slab, r3, w3mu, w3rho, None, None, *dims[2])

    for i, (bmu, brho, (_, dout)) in enumerate(
            ((b1mu, b1rho, dims[0]), (b2mu, b2rho, dims[1]), (b3mu, b3rho, dims[2]))):
        mu_slab = mu_slab.at[rb + i, :dout].set(jnp.asarray(bmu, jnp.float32))
        rho_slab = rho_slab.at[rb + i, :dout].set(jnp.asarray(brho, jnp.float32))

    layout = dict(dims=dims, rows=(r1, r2, r3, rb), R=R, L=L)
    return mu_slab, rho_slab, layout


def draw_eps(key, layout):
    """One N(0,1) slab covering every weight/bias epsilon (fresh per forward)."""
    return jax.random.normal(key, (layout["R"], layout["L"]), jnp.float32)


def bbp_heteroscedastic_forward(x, mu_slab, rho_slab, eps_slab, layout):
    """Fused BBP_Heteroscedastic_Model_UCI.forward (sample=True). Returns (y, KL)."""
    dims = layout["dims"]
    in1 = dims[0][0]
    out3 = dims[2][1]
    R, L = layout["R"], layout["L"]

    x = jnp.asarray(x, jnp.float32).reshape(-1, in1)
    n = x.shape[0]
    tile_m = min(512, _round_up(n, _SUBLANES))
    n_pad = _round_up(n, tile_m)
    if n_pad != n:
        x = jnp.pad(x, ((0, n_pad - n), (0, 0)))

    kernel = functools.partial(_bbp_kernel, dims=dims, rows=layout["rows"])

    y_pad, kl_row = pl.pallas_call(
        kernel,
        grid=(n_pad // tile_m,),
        in_specs=[
            pl.BlockSpec((tile_m, in1), lambda i: (i, 0)),   # x: tiled over batch
            pl.BlockSpec((R, L), lambda i: (0, 0)),          # mu slab (resident)
            pl.BlockSpec((R, L), lambda i: (0, 0)),          # rho slab (resident)
            pl.BlockSpec((R, L), lambda i: (0, 0)),          # eps slab (resident)
        ],
        out_specs=(
            pl.BlockSpec((tile_m, L), lambda i: (i, 0)),     # lane-dense y
            pl.BlockSpec((1, L), lambda i: (0, 0)),          # KL row (written once)
        ),
        out_shape=(
            jax.ShapeDtypeStruct((n_pad, L), jnp.float32),
            jax.ShapeDtypeStruct((1, L), jnp.float32),
        ),
        compiler_params=pltpu.CompilerParams(
            dimension_semantics=("arbitrary",)),
    )(x, mu_slab, rho_slab, eps_slab)

    return y_pad[:n, :out3], kl_row[0, 0]


def init_layer(key, in_dim, out_dim):
    """Matches BayesLinear_Normalq.__init__ parameter initialisation."""
    k1, k2, k3 = jax.random.split(key, 3)
    wmu = jax.random.uniform(k1, (in_dim, out_dim), jnp.float32, -0.01, 0.01)
    wrho = jnp.full((in_dim, out_dim), -3.0, jnp.float32)       # uniform_(-3, -3)
    bmu = jax.random.uniform(k2, (out_dim,), jnp.float32, -0.01, 0.01)
    brho = jax.random.uniform(k3, (out_dim,), jnp.float32, -4.0, -3.0)
    return wmu, wrho, bmu, brho


def _forward_reference(x, params, eps_slab, layout):
    """Pure-JAX reference using the same eps slab (for correctness check)."""
    dims = layout["dims"]
    r1, r2, r3, rb = layout["rows"]
    rows = (r1, r2, r3)
    h = jnp.asarray(x, jnp.float32).reshape(-1, dims[0][0])
    kl_total = jnp.float32(0.0)
    for li, ((wmu, wrho, bmu, brho), row, (din, dout)) in enumerate(
            zip(params, rows, dims)):
        wstd = jnp.log1p(jnp.exp(wrho))
        bstd = jnp.log1p(jnp.exp(brho))
        w = wmu + eps_slab[row:row + din, :dout] * wstd
        b = bmu + eps_slab[rb + li, :dout] * bstd
        h = h @ w + b
        if li < 2:
            h = jnp.maximum(h, 0.0)
        for mu, std in ((wmu, wstd), (bmu, bstd)):
            var = std * std
            kl_total = kl_total + 0.5 * jnp.sum(var + mu * mu - 1.0 - jnp.log(var))
    return h, kl_total


if __name__ == "__main__":
    input_dim, output_dim, num_units = 8, 2, 32
    batch = 16

    root = jax.random.PRNGKey(0)
    kx, k1, k2, k3, keps = jax.random.split(root, 5)

    x = jax.random.normal(kx, (batch, input_dim), jnp.float32)
    params = (
        init_layer(k1, input_dim, num_units),
        init_layer(k2, num_units, num_units),
        init_layer(k3, num_units, 2 * output_dim),
    )

    mu_slab, rho_slab, layout = pack_params(params)   # done once, not per call
    eps_slab = draw_eps(keps, layout)                 # fresh per forward pass

    y, kl_total = bbp_heteroscedastic_forward(x, mu_slab, rho_slab, eps_slab, layout)
    y = jax.block_until_ready(y)
    kl_total = jax.block_until_ready(kl_total)

    assert y.shape == (batch, 2 * output_dim), y.shape
    assert kl_total.shape == (), kl_total.shape
    assert bool(jnp.all(jnp.isfinite(y)))

    y_ref, kl_ref = _forward_reference(x, params, eps_slab, layout)
    assert jnp.allclose(y, y_ref, atol=2e-3, rtol=2e-3), (
        float(jnp.max(jnp.abs(y - y_ref))))
    assert abs(float(kl_total) - float(kl_ref)) <= 1e-3 * abs(float(kl_ref)) + 1e-3, (
        float(kl_total), float(kl_ref))

    print("KERNEL_OK")
</pallas_src>

<mosaic_0001>
module attributes {stable_mosaic.version = 11 : i64} {
  func.func @_bbp_kernel(%arg0: i32, %arg1: memref<16x8xf32, #tpu.memory_space<vmem>>, %arg2: memref<80x128xf32, #tpu.memory_space<vmem>>, %arg3: memref<80x128xf32, #tpu.memory_space<vmem>>, %arg4: memref<80x128xf32, #tpu.memory_space<vmem>>, %arg5: memref<16x128xf32, #tpu.memory_space<vmem>>, %arg6: memref<1x128xf32, #tpu.memory_space<vmem>>) attributes {dimension_semantics = [#tpu.dimension_semantics<arbitrary>], iteration_bounds = array<i64: 1>, scalar_prefetch = 0 : i64, scratch_operands = 0 : i64, tpu.core_type = #tpu.core_type<tc>, window_params = [{transform_indices = @transform_0, window_bounds = array<i64: 16, 8>}, {pipeline_mode = #tpu.pipeline_mode<synchronous>, transform_indices = @transform_1, window_bounds = array<i64: 80, 128>}, {pipeline_mode = #tpu.pipeline_mode<synchronous>, transform_indices = @transform_2, window_bounds = array<i64: 80, 128>}, {pipeline_mode = #tpu.pipeline_mode<synchronous>, transform_indices = @transform_3, window_bounds = array<i64: 80, 128>}, {transform_indices = @transform_4, window_bounds = array<i64: 16, 128>}, {pipeline_mode = #tpu.pipeline_mode<synchronous>, transform_indices = @transform_5, window_bounds = array<i64: 1, 128>}]} {
    %c0 = arith.constant 0 : index
    %c0_0 = arith.constant 0 : index
    %0 = vector.load %arg2[%c0, %c0_0] : memref<80x128xf32, #tpu.memory_space<vmem>>, vector<80x128xf32>
    %c0_1 = arith.constant 0 : index
    %c0_2 = arith.constant 0 : index
    %1 = vector.load %arg3[%c0_1, %c0_2] : memref<80x128xf32, #tpu.memory_space<vmem>>, vector<80x128xf32>
    %c0_3 = arith.constant 0 : index
    %c0_4 = arith.constant 0 : index
    %2 = vector.load %arg4[%c0_3, %c0_4] : memref<80x128xf32, #tpu.memory_space<vmem>>, vector<80x128xf32>
    %cst = arith.constant 0.000000e+00 : f32
    %3 = vector.broadcast %cst : f32 to vector<80x128xf32>
    %4 = arith.maximumf %1, %3 : vector<80x128xf32>
    %5 = math.absf %1 : vector<80x128xf32>
    %cst_5 = arith.constant 0.000000e+00 : f32
    %6 = vector.broadcast %cst_5 : f32 to vector<80x128xf32>
    %7 = arith.subf %6, %5 : vector<80x128xf32>
    %8 = math.exp %7 : vector<80x128xf32>
    %cst_6 = arith.constant 1.000000e+00 : f32
    %9 = vector.broadcast %cst_6 : f32 to vector<80x128xf32>
    %10 = arith.addf %9, %8 : vector<80x128xf32>
    %11 = math.log %10 : vector<80x128xf32>
    %12 = arith.addf %4, %11 : vector<80x128xf32>
    %13 = arith.mulf %2, %12 : vector<80x128xf32>
    %14 = arith.addf %0, %13 : vector<80x128xf32>
    %c0_i32 = arith.constant 0 : i32
    %15 = arith.cmpi eq, %arg0, %c0_i32 : i32
    %16 = arith.extui %15 : i1 to i32
    %c0_i32_7 = arith.constant 0 : i32
    %17 = arith.cmpi ne, %16, %c0_i32_7 : i32
    scf.if %17 {
      %cst_17 = arith.constant -1.500000e+01 : f32
      %39 = vector.broadcast %cst_17 : f32 to vector<80x128xf32>
      %40 = arith.cmpf ogt, %1, %39 : vector<80x128xf32>
      %cst_18 = arith.constant 1.000000e-30 : f32
      %41 = vector.broadcast %cst_18 : f32 to vector<80x128xf32>
      %42 = arith.maximumf %12, %41 : vector<80x128xf32>
      %43 = math.log %42 : vector<80x128xf32>
      %44 = arith.select %40, %43, %1 : vector<80x128xi1>, vector<80x128xf32>
      %45 = arith.mulf %12, %12 : vector<80x128xf32>
      %46 = arith.mulf %0, %0 : vector<80x128xf32>
      %47 = arith.addf %45, %46 : vector<80x128xf32>
      %cst_19 = arith.constant 1.000000e+00 : f32
      %48 = vector.broadcast %cst_19 : f32 to vector<80x128xf32>
      %49 = arith.subf %47, %48 : vector<80x128xf32>
      %cst_20 = arith.constant 2.000000e+00 : f32
      %50 = vector.broadcast %cst_20 : f32 to vector<80x128xf32>
      %51 = arith.mulf %50, %44 : vector<80x128xf32>
      %52 = arith.subf %49, %51 : vector<80x128xf32>
      %53 = vector.shape_cast %52 : vector<80x128xf32> to vector<1x80x128xf32>
      %cst_21 = arith.constant dense<0.000000e+00> : vector<1xf32>
      %54 = vector.multi_reduction <add>, %53, %cst_21 [1, 2] : vector<1x80x128xf32> to vector<1xf32>
      %55 = vector.shape_cast %54 : vector<1xf32> to vector<1x1x1xf32>
      %56 = vector.extract %55[0, 0, 0] : f32 from vector<1x1x1xf32>
      %cst_22 = arith.constant 5.000000e-01 : f32
      %57 = arith.mulf %cst_22, %56 : f32
      %58 = vector.broadcast %57 : f32 to vector<1x128xf32>
      %c0_23 = arith.constant 0 : index
      %c0_24 = arith.constant 0 : index
      %59 = vector.load %arg6[%c0_23, %c0_24] : memref<1x128xf32, #tpu.memory_space<vmem>>, vector<1x128xf32>
      tpu.vector_store %arg6[%c0_23, %c0_24], %58 {strides = array<i32>} : memref<1x128xf32, #tpu.memory_space<vmem>>, vector<1x128xf32>,
    } else {
    }
    %18 = vector.extract_strided_slice %14 {offsets = [0, 0], sizes = [8, 32], strides = [1, 1]} : vector<80x128xf32> to vector<8x32xf32>
    %19 = vector.extract_strided_slice %14 {offsets = [8, 0], sizes = [32, 32], strides = [1, 1]} : vector<80x128xf32> to vector<32x32xf32>
    %20 = vector.extract_strided_slice %14 {offsets = [40, 0], sizes = [32, 128], strides = [1, 1]} : vector<80x128xf32> to vector<32x128xf32>
    %21 = vector.extract_strided_slice %14 {offsets = [72, 0], sizes = [1, 32], strides = [1, 1]} : vector<80x128xf32> to vector<1x32xf32>
    %22 = vector.extract_strided_slice %14 {offsets = [73, 0], sizes = [1, 32], strides = [1, 1]} : vector<80x128xf32> to vector<1x32xf32>
    %23 = vector.extract_strided_slice %14 {offsets = [74, 0], sizes = [1, 128], strides = [1, 1]} : vector<80x128xf32> to vector<1x128xf32>
    %c0_8 = arith.constant 0 : index
    %c0_9 = arith.constant 0 : index
    %24 = vector.load %arg1[%c0_8, %c0_9] : memref<16x8xf32, #tpu.memory_space<vmem>>, vector<16x8xf32>
    %cst_10 = arith.constant dense<0.000000e+00> : vector<16x32xf32>
    %25 = tpu.matmul %24, %18, %cst_10 {dimension_numbers = #tpu.dot_dimension_numbers<[1], [0], [0], [1], [0, 0, 1, 1], [], []>} : vector<16x8xf32>, vector<8x32xf32>, vector<16x32xf32> -> vector<16x32xf32>
    %26 = vector.broadcast %21 : vector<1x32xf32> to vector<16x32xf32>
    %27 = arith.addf %25, %26 : vector<16x32xf32>
    %cst_11 = arith.constant 0.000000e+00 : f32
    %28 = vector.broadcast %cst_11 : f32 to vector<16x32xf32>
    %29 = arith.maximumf %27, %28 : vector<16x32xf32>
    %cst_12 = arith.constant dense<0.000000e+00> : vector<16x32xf32>
    %30 = tpu.matmul %29, %19, %cst_12 {dimension_numbers = #tpu.dot_dimension_numbers<[1], [0], [0], [1], [0, 0, 1, 1], [], []>} : vector<16x32xf32>, vector<32x32xf32>, vector<16x32xf32> -> vector<16x32xf32>
    %31 = vector.broadcast %22 : vector<1x32xf32> to vector<16x32xf32>
    %32 = arith.addf %30, %31 : vector<16x32xf32>
    %cst_13 = arith.constant 0.000000e+00 : f32
    %33 = vector.broadcast %cst_13 : f32 to vector<16x32xf32>
    %34 = arith.maximumf %32, %33 : vector<16x32xf32>
    %cst_14 = arith.constant dense<0.000000e+00> : vector<16x128xf32>
    %35 = tpu.matmul %34, %20, %cst_14 {dimension_numbers = #tpu.dot_dimension_numbers<[1], [0], [0], [1], [0, 0, 1, 1], [], []>} : vector<16x32xf32>, vector<32x128xf32>, vector<16x128xf32> -> vector<16x128xf32>
    %36 = vector.broadcast %23 : vector<1x128xf32> to vector<16x128xf32>
    %37 = arith.addf %35, %36 : vector<16x128xf32>
    %c0_15 = arith.constant 0 : index
    %c0_16 = arith.constant 0 : index
    %38 = vector.load %arg5[%c0_15, %c0_16] : memref<16x128xf32, #tpu.memory_space<vmem>>, vector<16x128xf32>
    tpu.vector_store %arg5[%c0_15, %c0_16], %37 {strides = array<i32>} : memref<16x128xf32, #tpu.memory_space<vmem>>, vector<16x128xf32>,
    return
  }
  func.func @transform_0(%arg0: i32) -> (i32, i32) {
    %c0_i32 = arith.constant 0 : i32
    %c0_i32_0 = arith.constant 0 : i32
    return %arg0, %c0_i32 : i32, i32
  }
  func.func @transform_1(%arg0: i32) -> (i32, i32) {
    %c0_i32 = arith.constant 0 : i32
    %c0_i32_0 = arith.constant 0 : i32
    %c0_i32_1 = arith.constant 0 : i32
    return %c0_i32, %c0_i32_0 : i32, i32
  }
  func.func @transform_2(%arg0: i32) -> (i32, i32) {
    %c0_i32 = arith.constant 0 : i32
    %c0_i32_0 = arith.constant 0 : i32
    %c0_i32_1 = arith.constant 0 : i32
    return %c0_i32, %c0_i32_0 : i32, i32
  }
  func.func @transform_3(%arg0: i32) -> (i32, i32) {
    %c0_i32 = arith.constant 0 : i32
    %c0_i32_0 = arith.constant 0 : i32
    %c0_i32_1 = arith.constant 0 : i32
    return %c0_i32, %c0_i32_0 : i32, i32
  }
  func.func @transform_4(%arg0: i32) -> (i32, i32) {
    %c0_i32 = arith.constant 0 : i32
    %c0_i32_0 = arith.constant 0 : i32
    return %arg0, %c0_i32 : i32, i32
  }
  func.func @transform_5(%arg0: i32) -> (i32, i32) {
    %c0_i32 = arith.constant 0 : i32
    %c0_i32_0 = arith.constant 0 : i32
    %c0_i32_1 = arith.constant 0 : i32
    return %c0_i32, %c0_i32_0 : i32, i32
  }
}

</mosaic_0001>

<llo_original>
// kernel: tpu_custom_call.1
$region0: #{tpu_custom_call.1}
  #allocation0 [shape = 'u32[]', space=smem, size = 0x4, offset = 0x4, fixed_abs, tag = 'smem constant byte address 0x4 - core index']
  #allocation1 [shape = 'u32[144,128]{1,0:T(1,128)}', space=vmem, size = 0x12000, scoped, tag = 'internal scratch']
  %s0 = inlined_call_operand.vmem [shape: f32[16,8], index: 0, kind: input, shape index: {}]
  %s1 = inlined_call_operand.hbm [shape: f32[80,128], index: 1, kind: input, shape index: {}]
  %s2 = inlined_call_operand.hbm [shape: f32[80,128], index: 2, kind: input, shape index: {}]
  %s3 = inlined_call_operand.hbm [shape: f32[80,128], index: 3, kind: input, shape index: {}]
  %s4 = inlined_call_operand.hbm [shape: f32[16,128], index: 4, kind: output, shape index: {0}]
  %s5 = inlined_call_operand.hbm [shape: f32[1,128], index: 5, kind: output, shape index: {1}]
  %6 = xla_tuple %s4, %s5
  %s7 = sld [smem:[#allocation0]]
  $region50: #{tpu_custom_call.1} parent=0
    _
  %s9 = ssub.s32 1, %s7
  %s10 = scalar_select 0, %s9, %s7
  $region1: #{tpu_custom_call.1} parent=0
    #allocation2 [shape = 'u8[40960]{0}', space=vmem, size = 0xa000, scoped, tag = 'input window, operand 1, single buffered']
    #allocation3 [shape = 's32[1]{0}', space=sflag, size = 0x4, scoped, tag = 'scoped memory for tpu_custom_call.1']
    #allocation4 [shape = 's32[1]{0}', space=sflag, size = 0x4, scoped, tag = 'scoped memory for tpu_custom_call.1']
    #allocation5 [shape = 'u8[40960]{0}', space=vmem, size = 0xa000, scoped, tag = 'input window, operand 2, single buffered']
    #allocation6 [shape = 's32[1]{0}', space=sflag, size = 0x4, scoped, tag = 'scoped memory for tpu_custom_call.1']
    #allocation7 [shape = 'u8[40960]{0}', space=vmem, size = 0xa000, scoped, tag = 'input window, operand 3, single buffered']
    #allocation8 [shape = 'u8[8192]{0}', space=vmem, size = 0x2000, scoped, tag = 'output window, operand 0, single buffered']
    #allocation9 [shape = 'u8[512]{0}', space=vmem, size = 0x400, scoped, tag = 'output window, operand 1, single buffered']
    #allocation10 [shape = 's32[1]{0}', space=sflag, size = 0x4, scoped, tag = 'scoped memory for tpu_custom_call.1']
    %11 = vsyncpa [#allocation3], 0
    %12 = vsyncpa [#allocation6], 0
    %13 = vsyncpa [#allocation4], 0
    %14 = vsyncpa [#allocation10], 0
    // Predicated region
    $region2: #{tpu_custom_call.1} parent=1 // pred_check
      _
    $region3: #{tpu_custom_call.1} parent=1 // pred_check_branch
      %16 = sbr.rel (0) target = $region5
    $region4: #{tpu_custom_call.1} parent=1 // pred_region
      _
    $region5: #{tpu_custom_call.1} parent=1 // pred_fallthru
      _
    // Predicated region
    $region6: #{tpu_custom_call.1} parent=1 // pred_check
      _
    $region7: #{tpu_custom_call.1} parent=1 // pred_check_branch
      %18 = sbr.rel (0) target = $region9
    $region8: #{tpu_custom_call.1} parent=1 // pred_region
      %s20 = ssub.s32 1280, 1280
      %21 = vsyncadd [#allocation3], %s20
      %s22 = sshll.u32 [#allocation2], 4
      %s23 = int_to_ptr.vmem [resolvable:$true] %s22
      %28 = dma.hbm_to_vmem [thread:$0]  %s1, 1280, %s23, [#allocation3], 128, 128, 8
    $region9: #{tpu_custom_call.1} parent=1 // pred_fallthru
      _
    // Predicated region
    $region10: #{tpu_custom_call.1} parent=1 // pred_check
      _
    $region11: #{tpu_custom_call.1} parent=1 // pred_check_branch
      %30 = sbr.rel (0) target = $region13
    $region12: #{tpu_custom_call.1} parent=1 // pred_region
      %s32 = ssub.s32 1280, 1280
      %33 = vsyncadd [#allocation6], %s32
      %s34 = sshll.u32 [#allocation5], 4
      %s35 = int_to_ptr.vmem [resolvable:$true] %s34
      %40 = dma.hbm_to_vmem [thread:$0]  %s2, 1280, %s35, [#allocation6], 128, 128, 8
    $region13: #{tpu_custom_call.1} parent=1 // pred_fallthru
      _
    // Predicated region
    $region14: #{tpu_custom_call.1} parent=1 // pred_check
      _
    $region15: #{tpu_custom_call.1} parent=1 // pred_check_branch
      %42 = sbr.rel (0) target = $region17
    $region16: #{tpu_custom_call.1} parent=1 // pred_region
      %s44 = ssub.s32 1280, 1280
      %45 = vsyncadd [#allocation6], %s44
      %s46 = sshll.u32 [#allocation7], 4
      %s47 = int_to_ptr.vmem [resolvable:$true] %s46
      %52 = dma.hbm_to_vmem [thread:$0]  %s3, 1280, %s47, [#allocation6], 128, 128, 8
    $region17: #{tpu_custom_call.1} parent=1 // pred_fallthru
      _
    // Predicated region
    $region18: #{tpu_custom_call.1} parent=1 // pred_check
      _
    $region19: #{tpu_custom_call.1} parent=1 // pred_check_branch
      %54 = sbr.rel (0) target = $region21
    $region20: #{tpu_custom_call.1} parent=1 // pred_region
      %55 = dma.done [#allocation3], 1280
    $region21: #{tpu_custom_call.1} parent=1 // pred_fallthru
      _
    // Predicated region
    $region22: #{tpu_custom_call.1} parent=1 // pred_check
      _
    $region23: #{tpu_custom_call.1} parent=1 // pred_check_branch
      %57 = sbr.rel (0) target = $region25
    $region24: #{tpu_custom_call.1} parent=1 // pred_region
      %58 = dma.done [#allocation6], 1280
    $region25: #{tpu_custom_call.1} parent=1 // pred_fallthru
      _
    // Predicated region
    $region26: #{tpu_custom_call.1} parent=1 // pred_check
      _
    $region27: #{tpu_custom_call.1} parent=1 // pred_check_branch
      %60 = sbr.rel (0) target = $region29
    $region28: #{tpu_custom_call.1} parent=1 // pred_region
      %61 = dma.done [#allocation6], 1280
    $region29: #{tpu_custom_call.1} parent=1 // pred_fallthru
      _
    %v62 = vld [vmem:[#allocation2] sm:$0xff]
    %v63 = vld [vmem:[#allocation2 + $0x8] sm:$0xff]
    %v64 = vld [vmem:[#allocation2 + $0x10] sm:$0xff]
    %v65 = vld [vmem:[#allocation2 + $0x18] sm:$0xff]
    %v66 = vld [vmem:[#allocation2 + $0x20] sm:$0xff]
    %v67 = vld [vmem:[#allocation2 + $0x28] sm:$0xff]
    %v68 = vld [vmem:[#allocation2 + $0x30] sm:$0xff]
    %v69 = vld [vmem:[#allocation2 + $0x38] sm:$0xff]
    %v70 = vld [vmem:[#allocation2 + $0x40] sm:$0xff]
    %v71 = vld [vmem:[#allocation2 + $0x48] sm:$0xff]
    %v72 = vld [vmem:[#allocation5] sm:$0xff]
    %v73 = vld [vmem:[#allocation5 + $0x8] sm:$0xff]
    %v74 = vld [vmem:[#allocation5 + $0x10] sm:$0xff]
    %v75 = vld [vmem:[#allocation5 + $0x18] sm:$0xff]
    %v76 = vld [vmem:[#allocation5 + $0x20] sm:$0xff]
    %v77 = vld [vmem:[#allocation5 + $0x28] sm:$0xff]
    %v78 = vld [vmem:[#allocation5 + $0x30] sm:$0xff]
    %v79 = vld [vmem:[#allocation5 + $0x38] sm:$0xff]
    %v80 = vld [vmem:[#allocation5 + $0x40] sm:$0xff]
    %v81 = vld [vmem:[#allocation5 + $0x48] sm:$0xff]
    %v82 = vld [vmem:[#allocation7] sm:$0xff]
    %v83 = vld [vmem:[#allocation7 + $0x8] sm:$0xff]
    %v84 = vld [vmem:[#allocation7 + $0x10] sm:$0xff]
    %v85 = vld [vmem:[#allocation7 + $0x18] sm:$0xff]
    %v86 = vld [vmem:[#allocation7 + $0x20] sm:$0xff]
    %v87 = vld [vmem:[#allocation7 + $0x28] sm:$0xff]
    %v88 = vld [vmem:[#allocation7 + $0x30] sm:$0xff]
    %v89 = vld [vmem:[#allocation7 + $0x38] sm:$0xff]
    %v90 = vld [vmem:[#allocation7 + $0x40] sm:$0xff]
    %v91 = vld [vmem:[#allocation7 + $0x48] sm:$0xff]
    %v92 = vmax.f32 %v72, 0.0
    %v93 = vmax.f32 %v73, 0.0
    %v94 = vmax.f32 %v74, 0.0
    %v95 = vmax.f32 %v75, 0.0
    %v96 = vmax.f32 %v76, 0.0
    %v97 = vmax.f32 %v77, 0.0
    %v98 = vmax.f32 %v78, 0.0
    %v99 = vmax.f32 %v79, 0.0
    %v100 = vmax.f32 %v80, 0.0
    %v101 = vmax.f32 %v81, 0.0
    %v102 = vand.u32 2147483647, %v72
    %v103 = vand.u32 2147483647, %v73
    %v104 = vand.u32 2147483647, %v74
    %v105 = vand.u32 2147483647, %v75
    %v106 = vand.u32 2147483647, %v76
    %v107 = vand.u32 2147483647, %v77
    %v108 = vand.u32 2147483647, %v78
    %v109 = vand.u32 2147483647, %v79
    %v110 = vand.u32 2147483647, %v80
    %v111 = vand.u32 2147483647, %v81
    %v112 = vsub.f32 0.0, %v102
    %v113 = vsub.f32 0.0, %v103
    %v114 = vsub.f32 0.0, %v104
    %v115 = vsub.f32 0.0, %v105
    %v116 = vsub.f32 0.0, %v106
    %v117 = vsub.f32 0.0, %v107
    %v118 = vsub.f32 0.0, %v108
    %v119 = vsub.f32 0.0, %v109
    %v120 = vsub.f32 0.0, %v110
    %v121 = vsub.f32 0.0, %v111
    %v122 = vmul.f32 %v112, 1.442695
    %v123 = vpow.pop %v122
    %v124 = vmul.f32 %v113, 1.442695
    %v125 = vpow.pop %v124
    %v126 = vmul.f32 %v114, 1.442695
    %v127 = vpow.pop %v126
    %v128 = vmul.f32 %v115, 1.442695
    %v129 = vpow.pop %v128
    %v130 = vmul.f32 %v116, 1.442695
    %v131 = vpow.pop %v130
    %v132 = vmul.f32 %v117, 1.442695
    %v133 = vpow.pop %v132
    %v134 = vmul.f32 %v118, 1.442695
    %v135 = vpow.pop %v134
    %v136 = vmul.f32 %v119, 1.442695
    %v137 = vpow.pop %v136
    %v138 = vmul.f32 %v120, 1.442695
    %v139 = vpow.pop %v138
    %v140 = vmul.f32 %v121, 1.442695
    %v141 = vpow.pop %v140
    %v142 = vadd.f32 %v123, 1.0
    %v143 = vadd.f32 %v125, 1.0
    %v144 = vadd.f32 %v127, 1.0
    %v145 = vadd.f32 %v129, 1.0
    %v146 = vadd.f32 %v131, 1.0
    %v147 = vadd.f32 %v133, 1.0
    %v148 = vadd.f32 %v135, 1.0
    %v149 = vadd.f32 %v137, 1.0
    %v150 = vadd.f32 %v139, 1.0
    %v151 = vadd.f32 %v141, 1.0
    %v152 = vlog2.pop %v142
    %v153 = vmul.f32 %v152, 0.6931472
    %v154 = vlog2.pop %v143
    %v155 = vmul.f32 %v154, 0.6931472
    %v156 = vlog2.pop %v144
    %v157 = vmul.f32 %v156, 0.6931472
    %v158 = vlog2.pop %v145
    %v159 = vmul.f32 %v158, 0.6931472
    %v160 = vlog2.pop %v146
    %v161 = vmul.f32 %v160, 0.6931472
    %v162 = vlog2.pop %v147
    %v163 = vmul.f32 %v162, 0.6931472
    %v164 = vlog2.pop %v148
    %v165 = vmul.f32 %v164, 0.6931472
    %v166 = vlog2.pop %v149
    %v167 = vmul.f32 %v166, 0.6931472
    %v168 = vlog2.pop %v150
    %v169 = vmul.f32 %v168, 0.6931472
    %v170 = vlog2.pop %v151
    %v171 = vmul.f32 %v170, 0.6931472
    %v172 = vadd.f32 %v92, %v153
    %v173 = vadd.f32 %v93, %v155
    %v174 = vadd.f32 %v94, %v157
    %v175 = vadd.f32 %v95, %v159
    %v176 = vadd.f32 %v96, %v161
    %v177 = vadd.f32 %v97, %v163
    %v178 = vadd.f32 %v98, %v165
    %v179 = vadd.f32 %v99, %v167
    %v180 = vadd.f32 %v100, %v169
    %v181 = vadd.f32 %v101, %v171
    %v182 = vmul.f32 %v82, %v172
    %v183 = vmul.f32 %v83, %v173
    %v184 = vmul.f32 %v84, %v174
    %v185 = vmul.f32 %v85, %v175
    %v186 = vmul.f32 %v86, %v176
    %v187 = vmul.f32 %v87, %v177
    %v188 = vmul.f32 %v88, %v178
    %v189 = vmul.f32 %v89, %v179
    %v190 = vmul.f32 %v90, %v180
    %v191 = vmul.f32 %v91, %v181
    %v192 = vadd.f32 %v62, %v182
    %v193 = vadd.f32 %v63, %v183
    %v194 = vadd.f32 %v64, %v184
    %v195 = vadd.f32 %v65, %v185
    %v196 = vadd.f32 %v66, %v186
    %v197 = vadd.f32 %v67, %v187
    %v198 = vadd.f32 %v68, %v188
    %v199 = vadd.f32 %v69, %v189
    %v200 = vadd.f32 %v70, %v190
    %v201 = vadd.f32 %v71, %v191
    %p202 = scmp.eq.s32.totalorder 0, 0
    // Predicated region
    $region30: #{tpu_custom_call.1} parent=1 // pred_check
      %p203 = pneg %p202
    $region31: #{tpu_custom_call.1} parent=1 // pred_check_branch
      %205 = sbr.rel (%p203) target = $region33
    $region32: #{tpu_custom_call.1} parent=1 // pred_region
      %vm206 = vcmp.gt.f32.partialorder %v72, -15.0
      %vm207 = vcmp.gt.f32.partialorder %v73, -15.0
      %vm208 = vcmp.gt.f32.partialorder %v74, -15.0
      %vm209 = vcmp.gt.f32.partialorder %v75, -15.0
      %vm210 = vcmp.gt.f32.partialorder %v76, -15.0
      %vm211 = vcmp.gt.f32.partialorder %v77, -15.0
      %vm212 = vcmp.gt.f32.partialorder %v78, -15.0
      %vm213 = vcmp.gt.f32.partialorder %v79, -15.0
      %vm214 = vcmp.gt.f32.partialorder %v80, -15.0
      %vm215 = vcmp.gt.f32.partialorder %v81, -15.0
      %v216 = vmax.f32 %v172, 1e-30
      %v217 = vmax.f32 %v173, 1e-30
      %v218 = vmax.f32 %v174, 1e-30
      %v219 = vmax.f32 %v175, 1e-30
      %v220 = vmax.f32 %v176, 1e-30
      %v221 = vmax.f32 %v177, 1e-30
      %v222 = vmax.f32 %v178, 1e-30
      %v223 = vmax.f32 %v179, 1e-30
      %v224 = vmax.f32 %v180, 1e-30
      %v225 = vmax.f32 %v181, 1e-30
      %v226 = vlog2.pop %v216
      %v227 = vmul.f32 %v226, 0.6931472
      %v228 = vlog2.pop %v217
      %v229 = vmul.f32 %v228, 0.6931472
      %v230 = vlog2.pop %v218
      %v231 = vmul.f32 %v230, 0.6931472
      %v232 = vlog2.pop %v219
      %v233 = vmul.f32 %v232, 0.6931472
      %v234 = vlog2.pop %v220
      %v235 = vmul.f32 %v234, 0.6931472
      %v236 = vlog2.pop %v221
      %v237 = vmul.f32 %v236, 0.6931472
      %v238 = vlog2.pop %v222
      %v239 = vmul.f32 %v238, 0.6931472
      %v240 = vlog2.pop %v223
      %v241 = vmul.f32 %v240, 0.6931472
      %v242 = vlog2.pop %v224
      %v243 = vmul.f32 %v242, 0.6931472
      %v244 = vlog2.pop %v225
      %v245 = vmul.f32 %v244, 0.6931472
      %v246 = vsel %vm206, %v227, %v72
      %v247 = vsel %vm207, %v229, %v73
      %v248 = vsel %vm208, %v231, %v74
      %v249 = vsel %vm209, %v233, %v75
      %v250 = vsel %vm210, %v235, %v76
      %v251 = vsel %vm211, %v237, %v77
      %v252 = vsel %vm212, %v239, %v78
      %v253 = vsel %vm213, %v241, %v79
      %v254 = vsel %vm214, %v243, %v80
      %v255 = vsel %vm215, %v245, %v81
      %v256 = vmul.f32 %v172, %v172
      %v257 = vmul.f32 %v173, %v173
      %v258 = vmul.f32 %v174, %v174
      %v259 = vmul.f32 %v175, %v175
      %v260 = vmul.f32 %v176, %v176
      %v261 = vmul.f32 %v177, %v177
      %v262 = vmul.f32 %v178, %v178
      %v263 = vmul.f32 %v179, %v179
      %v264 = vmul.f32 %v180, %v180
      %v265 = vmul.f32 %v181, %v181
      %v266 = vmul.f32 %v62, %v62
      %v267 = vmul.f32 %v63, %v63
      %v268 = vmul.f32 %v64, %v64
      %v269 = vmul.f32 %v65, %v65
      %v270 = vmul.f32 %v66, %v66
      %v271 = vmul.f32 %v67, %v67
      %v272 = vmul.f32 %v68, %v68
      %v273 = vmul.f32 %v69, %v69
      %v274 = vmul.f32 %v70, %v70
      %v275 = vmul.f32 %v71, %v71
      %v276 = vadd.f32 %v256, %v266
      %v277 = vadd.f32 %v257, %v267
      %v278 = vadd.f32 %v258, %v268
      %v279 = vadd.f32 %v259, %v269
      %v280 = vadd.f32 %v260, %v270
      %v281 = vadd.f32 %v261, %v271
      %v282 = vadd.f32 %v262, %v272
      %v283 = vadd.f32 %v263, %v273
      %v284 = vadd.f32 %v264, %v274
      %v285 = vadd.f32 %v265, %v275
      %v286 = vsub.f32 %v276, 1.0
      %v287 = vsub.f32 %v277, 1.0
      %v288 = vsub.f32 %v278, 1.0
      %v289 = vsub.f32 %v279, 1.0
      %v290 = vsub.f32 %v280, 1.0
      %v291 = vsub.f32 %v281, 1.0
      %v292 = vsub.f32 %v282, 1.0
      %v293 = vsub.f32 %v283, 1.0
      %v294 = vsub.f32 %v284, 1.0
      %v295 = vsub.f32 %v285, 1.0
      %v296 = vmul.f32 %v246, 2.0
      %v297 = vmul.f32 %v247, 2.0
      %v298 = vmul.f32 %v248, 2.0
      %v299 = vmul.f32 %v249, 2.0
      %v300 = vmul.f32 %v250, 2.0
      %v301 = vmul.f32 %v251, 2.0
      %v302 = vmul.f32 %v252, 2.0
      %v303 = vmul.f32 %v253, 2.0
      %v304 = vmul.f32 %v254, 2.0
      %v305 = vmul.f32 %v255, 2.0
      %v306 = vsub.f32 %v286, %v296
      %v307 = vsub.f32 %v287, %v297
      %v308 = vsub.f32 %v288, %v298
      %v309 = vsub.f32 %v289, %v299
      %v310 = vsub.f32 %v290, %v300
      %v311 = vsub.f32 %v291, %v301
      %v312 = vsub.f32 %v292, %v302
      %v313 = vsub.f32 %v293, %v303
      %v314 = vsub.f32 %v294, %v304
      %v315 = vsub.f32 %v295, %v305
      %v316 = vadd.f32 %v306, %v307
      %v317 = vadd.f32 %v316, %v308
      %v318 = vadd.f32 %v317, %v309
      %v319 = vadd.f32 %v318, %v310
      %v320 = vadd.f32 %v319, %v311
      %v321 = vadd.f32 %v320, %v312
      %v322 = vadd.f32 %v321, %v313
      %v323 = vadd.f32 %v322, %v314
      %v324 = vadd.f32 %v323, %v315
      %325 = vadd.xlane.f32.xlu0 %v324
      %v326 = vpop.xlane.xlu0 %325
      %v327 = vrot.slane %v326, 4
      %v328 = vadd.f32 %v326, %v327
      %v329 = vrot.slane %v328, 2
      %v330 = vadd.f32 %v328, %v329
      %v331 = vrot.slane %v330, 1
      %v332 = vadd.f32 %v330, %v331
      %s333 = vtos %v332
      %s334 = smul.f32 %s333, 0.5
      %v335 = vstv %s334
      %336 = vst [vmem:[#allocation9] sm:$0x1] %v335
    $region33: #{tpu_custom_call.1} parent=1 // pred_fallthru
      _
    %v337 = vld [vmem:[%s0] sm:$0xff]
    %v338 = vld [vmem:[%s0 + $0x8] sm:$0xff]
    %v339 = vlaneseq
    %v340 = vshrl.u32 %v339, 7
    %v341 = vsub.s32 0, %v340
    %v342 = vrot.slane %v201, %v341
    %vm343 = vcmask 64512
    %v345 = vsel %vm343, %v337, 0
    %v348 = vsel %vm343, %v338, 0
    %350 = vmatprep.subr.mxu0 0.0
    %351 = vmatpush1.msra.mxu0 %v192
    %352 = vmatprep.subr.mxu0 0.0
    %353 = vmatpush1.msra.mxu0 0.0
    %354 = vmatprep.subr.mxu0 0.0
    %355 = vmatpush1.msra.mxu0 0.0
    %356 = vmatprep.subr.mxu0 0.0
    %357 = vmatpush1.msra.mxu0 0.0
    %358 = vmatprep.subr.mxu0 0.0
    %359 = vmatpush1.msra.mxu0 0.0
    %360 = vmatprep.subr.mxu0 0.0
    %361 = vmatpush1.msra.mxu0 0.0
    %362 = vmatprep.subr.mxu0 0.0
    %363 = vmatpush1.msra.mxu0 0.0
    %364 = vmatprep.subr.mxu0 0.0
    %365 = vmatpush1.msra.mxu0 0.0
    %366 = vmatprep.subr.mxu0 0.0
    %367 = vmatpush1.msra.mxu0 0.0
    %368 = vmatprep.subr.mxu0 0.0
    %369 = vmatpush1.msra.mxu0 0.0
    %370 = vmatprep.subr.mxu0 0.0
    %371 = vmatpush1.msra.mxu0 0.0
    %372 = vmatprep.subr.mxu0 0.0
    %373 = vmatpush1.msra.mxu0 0.0
    %374 = vmatprep.subr.mxu0 0.0
    %375 = vmatpush1.msra.mxu0 0.0
    %376 = vmatprep.subr.mxu0 0.0
    %377 = vmatpush1.msra.mxu0 0.0
    %378 = vmatprep.subr.mxu0 0.0
    %379 = vmatpush1.msra.mxu0 0.0
    %380 = vmatprep.subr.mxu0 0.0
    %381 = vmatpush1.msra.mxu0 0.0
    %382 = vmatprep.subr.mxu0 0.0
    %383 = vmatpush1.msra.mxu0 0.0
    %384 = vmatprep.subr.mxu0 0.0
    %385 = vmatpush1.msra.mxu0 0.0
    %386 = vmatprep.subr.mxu0 0.0
    %387 = vmatpush1.msra.mxu0 0.0
    %388 = vmatprep.subr.mxu0 0.0
    %389 = vmatpush1.msra.mxu0 0.0
    %390 = vmatprep.subr.mxu0 0.0
    %391 = vmatpush1.msra.mxu0 0.0
    %392 = vmatprep.subr.mxu0 0.0
    %393 = vmatpush1.msra.mxu0 0.0
    %394 = vmatprep.subr.mxu0 0.0
    %395 = vmatpush1.msra.mxu0 0.0
    %396 = vmatprep.subr.mxu0 0.0
    %397 = vmatpush1.msra.mxu0 0.0
    %398 = vmatprep.subr.mxu0 0.0
    %399 = vmatpush1.msra.mxu0 0.0
    %400 = vmatprep.subr.mxu0 0.0
    %401 = vmatpush1.msra.mxu0 0.0
    %402 = vmatprep.subr.mxu0 0.0
    %403 = vmatpush1.msra.mxu0 0.0
    %404 = vmatprep.subr.mxu0 0.0
    %405 = vmatpush1.msra.mxu0 0.0
    %406 = vmatprep.subr.mxu0 0.0
    %407 = vmatpush1.msra.mxu0 0.0
    %408 = vmatprep.subr.mxu0 0.0
    %409 = vmatpush1.msra.mxu0 0.0
    %410 = vmatprep.subr.mxu0 0.0
    %411 = vmatpush1.msra.mxu0 0.0
    %412 = vmatprep.subr.mxu0 0.0
    %413 = vmatpush1.msra.mxu0 0.0
    %414 = vmatprep.mubr.f32.mxu0 0.0
    %415 = vmatmul.mubr.f32.gmra.mrb[0].mxu0 %v345
    %v416 = vpop.f32.mrb[0].mxu0
    %v417 = vadd.f32 %v342, %v416
    %v418 = vpop.f32.mrb[0].mxu0
    %419 = vmatprep.mubr.f32.mxu0 0.0
    %420 = vmatmul.mubr.f32.gmra.mrb[0].mxu0 %v348
    %v421 = vpop.f32.mrb[0].mxu0
    %v422 = vadd.f32 %v342, %v421
    %v423 = vpop.f32.mrb[0].mxu0
    %424 = vdwg.mxu0
    %v425 = vmax.f32 %v417, 0.0
    %v426 = vmax.f32 %v422, 0.0
    %v427 = vlaneseq
    %v428 = vshrl.u32 %v427, 7
    %v429 = vsub.s32 1, %v428
    %v430 = vrot.slane %v201, %v429
    %vm431 = vcmask 261120
    %v433 = vsel %vm431, %v425, 0
    %v436 = vsel %vm431, %v426, 0
    %438 = vmatprep.subr.mxu0 0.0
    %439 = vmatpush1.msra.mxu0 %v193
    %440 = vmatprep.subr.mxu0 0.0
    %441 = vmatpush1.msra.mxu0 %v194
    %442 = vmatprep.subr.mxu0 0.0
    %443 = vmatpush1.msra.mxu0 %v195
    %444 = vmatprep.subr.mxu0 0.0
    %445 = vmatpush1.msra.mxu0 %v196
    %446 = vmatprep.subr.mxu0 0.0
    %447 = vmatpush1.msra.mxu0 0.0
    %448 = vmatprep.subr.mxu0 0.0
    %449 = vmatpush1.msra.mxu0 0.0
    %450 = vmatprep.subr.mxu0 0.0
    %451 = vmatpush1.msra.mxu0 0.0
    %452 = vmatprep.subr.mxu0 0.0
    %453 = vmatpush1.msra.mxu0 0.0
    %454 = vmatprep.subr.mxu0 0.0
    %455 = vmatpush1.msra.mxu0 0.0
    %456 = vmatprep.subr.mxu0 0.0
    %457 = vmatpush1.msra.mxu0 0.0
    %458 = vmatprep.subr.mxu0 0.0
    %459 = vmatpush1.msra.mxu0 0.0
    %460 = vmatprep.subr.mxu0 0.0
    %461 = vmatpush1.msra.mxu0 0.0
    %462 = vmatprep.subr.mxu0 0.0
    %463 = vmatpush1.msra.mxu0 0.0
    %464 = vmatprep.subr.mxu0 0.0
    %465 = vmatpush1.msra.mxu0 0.0
    %466 = vmatprep.subr.mxu0 0.0
    %467 = vmatpush1.msra.mxu0 0.0
    %468 = vmatprep.subr.mxu0 0.0
    %469 = vmatpush1.msra.mxu0 0.0
    %470 = vmatprep.subr.mxu0 0.0
    %471 = vmatpush1.msra.mxu0 0.0
    %472 = vmatprep.subr.mxu0 0.0
    %473 = vmatpush1.msra.mxu0 0.0
    %474 = vmatprep.subr.mxu0 0.0
    %475 = vmatpush1.msra.mxu0 0.0
    %476 = vmatprep.subr.mxu0 0.0
    %477 = vmatpush1.msra.mxu0 0.0
    %478 = vmatprep.subr.mxu0 0.0
    %479 = vmatpush1.msra.mxu0 0.0
    %480 = vmatprep.subr.mxu0 0.0
    %481 = vmatpush1.msra.mxu0 0.0
    %482 = vmatprep.subr.mxu0 0.0
    %483 = vmatpush1.msra.mxu0 0.0
    %484 = vmatprep.subr.mxu0 0.0
    %485 = vmatpush1.msra.mxu0 0.0
    %486 = vmatprep.subr.mxu0 0.0
    %487 = vmatpush1.msra.mxu0 0.0
    %488 = vmatprep.subr.mxu0 0.0
    %489 = vmatpush1.msra.mxu0 0.0
    %490 = vmatprep.subr.mxu0 0.0
    %491 = vmatpush1.msra.mxu0 0.0
    %492 = vmatprep.subr.mxu0 0.0
    %493 = vmatpush1.msra.mxu0 0.0
    %494 = vmatprep.subr.mxu0 0.0
    %495 = vmatpush1.msra.mxu0 0.0
    %496 = vmatprep.subr.mxu0 0.0
    %497 = vmatpush1.msra.mxu0 0.0
    %498 = vmatprep.subr.mxu0 0.0
    %499 = vmatpush1.msra.mxu0 0.0
    %500 = vmatprep.subr.mxu0 0.0
    %501 = vmatpush1.msra.mxu0 0.0
    %502 = vmatprep.mubr.f32.mxu0 0.0
    %503 = vmatmul.mubr.f32.gmra.mrb[0].mxu0 %v433
    %v504 = vpop.f32.mrb[0].mxu0
    %v505 = vadd.f32 %v430, %v504
    %v506 = vpop.f32.mrb[0].mxu0
    %507 = vmatprep.mubr.f32.mxu0 0.0
    %508 = vmatmul.mubr.f32.gmra.mrb[0].mxu0 %v436
    %v509 = vpop.f32.mrb[0].mxu0
    %v510 = vadd.f32 %v430, %v509
    %v511 = vpop.f32.mrb[0].mxu0
    %512 = vdwg.mxu0
    %v513 = vmax.f32 %v505, 0.0
    %v514 = vmax.f32 %v510, 0.0
    %v515 = vlaneseq
    %v516 = vshrl.u32 %v515, 7
    %v517 = vsub.s32 2, %v516
    %v518 = vrot.slane %v201, %v517
    %v520 = vsel %vm431, %v513, 0
    %v523 = vsel %vm431, %v514, 0
    %525 = vmatprep.subr.mxu0 0.0
    %526 = vmatpush1.msra.mxu0 %v197
    %527 = vmatprep.subr.mxu0 0.0
    %528 = vmatpush1.msra.mxu0 %v198
    %529 = vmatprep.subr.mxu0 0.0
    %530 = vmatpush1.msra.mxu0 %v199
    %531 = vmatprep.subr.mxu0 0.0
    %532 = vmatpush1.msra.mxu0 %v200
    %533 = vmatprep.subr.mxu0 0.0
    %534 = vmatpush1.msra.mxu0 0.0
    %535 = vmatprep.subr.mxu0 0.0
    %536 = vmatpush1.msra.mxu0 0.0
    %537 = vmatprep.subr.mxu0 0.0
    %538 = vmatpush1.msra.mxu0 0.0
    %539 = vmatprep.subr.mxu0 0.0
    %540 = vmatpush1.msra.mxu0 0.0
    %541 = vmatprep.subr.mxu0 0.0
    %542 = vmatpush1.msra.mxu0 0.0
    %543 = vmatprep.subr.mxu0 0.0
    %544 = vmatpush1.msra.mxu0 0.0
    %545 = vmatprep.subr.mxu0 0.0
    %546 = vmatpush1.msra.mxu0 0.0
    %547 = vmatprep.subr.mxu0 0.0
    %548 = vmatpush1.msra.mxu0 0.0
    %549 = vmatprep.subr.mxu0 0.0
    %550 = vmatpush1.msra.mxu0 0.0
    %551 = vmatprep.subr.mxu0 0.0
    %552 = vmatpush1.msra.mxu0 0.0
    %553 = vmatprep.subr.mxu0 0.0
    %554 = vmatpush1.msra.mxu0 0.0
    %555 = vmatprep.subr.mxu0 0.0
    %556 = vmatpush1.msra.mxu0 0.0
    %557 = vmatprep.subr.mxu0 0.0
    %558 = vmatpush1.msra.mxu0 0.0
    %559 = vmatprep.subr.mxu0 0.0
    %560 = vmatpush1.msra.mxu0 0.0
    %561 = vmatprep.subr.mxu0 0.0
    %562 = vmatpush1.msra.mxu0 0.0
    %563 = vmatprep.subr.mxu0 0.0
    %564 = vmatpush1.msra.mxu0 0.0
    %565 = vmatprep.subr.mxu0 0.0
    %566 = vmatpush1.msra.mxu0 0.0
    %567 = vmatprep.subr.mxu0 0.0
    %568 = vmatpush1.msra.mxu0 0.0
    %569 = vmatprep.subr.mxu0 0.0
    %570 = vmatpush1.msra.mxu0 0.0
    %571 = vmatprep.subr.mxu0 0.0
    %572 = vmatpush1.msra.mxu0 0.0
    %573 = vmatprep.subr.mxu0 0.0
    %574 = vmatpush1.msra.mxu0 0.0
    %575 = vmatprep.subr.mxu0 0.0
    %576 = vmatpush1.msra.mxu0 0.0
    %577 = vmatprep.subr.mxu0 0.0
    %578 = vmatpush1.msra.mxu0 0.0
    %579 = vmatprep.subr.mxu0 0.0
    %580 = vmatpush1.msra.mxu0 0.0
    %581 = vmatprep.subr.mxu0 0.0
    %582 = vmatpush1.msra.mxu0 0.0
    %583 = vmatprep.subr.mxu0 0.0
    %584 = vmatpush1.msra.mxu0 0.0
    %585 = vmatprep.subr.mxu0 0.0
    %586 = vmatpush1.msra.mxu0 0.0
    %587 = vmatprep.subr.mxu0 0.0
    %588 = vmatpush1.msra.mxu0 0.0
    %589 = vmatprep.mubr.f32.mxu0 0.0
    %590 = vmatmul.mubr.f32.gmra.mrb[0].mxu0 %v520
    %v591 = vpop.f32.mrb[0].mxu0
    %v592 = vadd.f32 %v518, %v591
    %v593 = vpop.f32.mrb[0].mxu0
    %594 = vmatprep.mubr.f32.mxu0 0.0
    %595 = vmatmul.mubr.f32.gmra.mrb[0].mxu0 %v523
    %v596 = vpop.f32.mrb[0].mxu0
    %v597 = vadd.f32 %v518, %v596
    %v598 = vpop.f32.mrb[0].mxu0
    %599 = vdwg.mxu0
    %600 = vst [vmem:[#allocation8] sm:$0xff] %v592
    %601 = vst [vmem:[#allocation8 + $0x8] sm:$0xff] %v597
    // Predicated region
    $region34: #{tpu_custom_call.1} parent=1 // pred_check
      _
    $region35: #{tpu_custom_call.1} parent=1 // pred_check_branch
      %603 = sbr.rel (0) target = $region37
    $region36: #{tpu_custom_call.1} parent=1 // pred_region
      %s605 = ssub.s32 256, 256
      %606 = vsyncadd [#allocation4], %s605
      %s607 = sshll.u32 [#allocation8], 4
      %s608 = int_to_ptr.vmem [resolvable:$true] %s607
      %613 = dma.vmem_to_hbm [thread:$0]  %s608, 256, %s4, [#allocation4], 128, 128, 8
    $region37: #{tpu_custom_call.1} parent=1 // pred_fallthru
      _
    // Predicated region
    $region38: #{tpu_custom_call.1} parent=1 // pred_check
      _
    $region39: #{tpu_custom_call.1} parent=1 // pred_check_branch
      %615 = sbr.rel (0) target = $region41
    $region40: #{tpu_custom_call.1} parent=1 // pred_region
      %s617 = ssub.s32 16, 16
      %618 = vsyncadd [#allocation10], %s617
      %s620 = sshll.u32 [#allocation9], 4
      %s621 = int_to_ptr.vmem [resolvable:$true] %s620
      %623 = dma.vmem_to_hbm [thread:$0]  %s621, 16, %s5, [#allocation10]
    $region41: #{tpu_custom_call.1} parent=1 // pred_fallthru
      _
    // Predicated region
    $region42: #{tpu_custom_call.1} parent=1 // pred_check
      _
    $region43: #{tpu_custom_call.1} parent=1 // pred_check_branch
      %625 = sbr.rel (0) target = $region45
    $region44: #{tpu_custom_call.1} parent=1 // pred_region
      %626 = dma.done [#allocation4], 256
    $region45: #{tpu_custom_call.1} parent=1 // pred_fallthru
      _
    // Predicated region
    $region46: #{tpu_custom_call.1} parent=1 // pred_check
      _
    $region47: #{tpu_custom_call.1} parent=1 // pred_check_branch
      %628 = sbr.rel (0) target = $region49
    $region48: #{tpu_custom_call.1} parent=1 // pred_region
      %629 = dma.done [#allocation10], 16
    $region49: #{tpu_custom_call.1} parent=1 // pred_fallthru
      _
    %630 = vsyncpa [#allocation3], 1
    %631 = vsyncpa [#allocation6], 1
    %632 = vsyncpa [#allocation4], 1
    %633 = vsyncpa [#allocation10], 1

</llo_original>
